<compile_context>
chip_gen: v6e
topology: v6e:2x2x1
jax: 0.10.0
libtpu: 0.0.40
codegen_flags: <defaults>
</compile_context>

<pallas_src>
import jax
import jax.numpy as jnp
from jax.experimental import pallas as pl
from jax.experimental.pallas import tpu as pltpu


# ----------------------------- glue (plain JAX) ------------------------------

def x_to_X(x, X_size, channel_out=3):
    """Place batch of small images x in the center of a zero image of size X_size."""
    B, _, h, w = x.shape
    start_x = X_size // 2 - h // 2
    start_y = X_size // 2 - w // 2
    x = jnp.broadcast_to(x, (B, channel_out, h, w))
    X = jnp.zeros((B, channel_out, X_size, X_size), dtype=x.dtype)
    return X.at[:, :, start_x:start_x + h, start_y:start_y + w].set(x)


def get_mask(patch_size, X_size, channel_out, batch_size=1):
    ones = jnp.ones((batch_size, channel_out, patch_size, patch_size), jnp.float32)
    return x_to_X(ones, X_size, channel_out)


def _round_up(n, m):
    return ((n + m - 1) // m) * m


# ---------------- static (weight-derived) precomputation: run ONCE -----------

def make_static_params(w, b, input_size, patch_size, channel_out, num_classes,
                       tk=256, tn=128):
    """Everything that depends only on w/b/geometry. Hoisted out of the forward."""
    C, H, W = channel_out, input_size, input_size
    D = C * H * W
    Kp = _round_up(num_classes, tn)            # 10  -> 128 (lane-dense output)
    Dpad = _round_up(D, tk)                    # reduction dim padded to tile multiple
    Dp_raw = C * patch_size * patch_size       # 3*8*8 = 192
    Dp = _round_up(Dp_raw, 128)                # 192 -> 256

    # Flat indices (row-major over (C, H, W)) of the centered patch window.
    start = input_size // 2 - patch_size // 2
    ci = jnp.arange(C)[:, None, None]
    ri = (start + jnp.arange(patch_size))[None, :, None]
    cj = (start + jnp.arange(patch_size))[None, None, :]
    patch_idx = (ci * H * W + ri * W + cj).reshape(-1)        # (Dp_raw,)

    # bf16 weight streams: halve HBM traffic, MXU-native; f32 accumulation in-kernel.
    w_pad = jnp.zeros((Dpad, Kp), jnp.float32).at[:D, :num_classes].set(w)
    w_bf16 = w_pad.astype(jnp.bfloat16)
    w_patch = jnp.zeros((Dp, Kp), jnp.bfloat16).at[:Dp_raw].set(w_bf16[patch_idx])
    b_pad = jnp.zeros((1, Kp), jnp.float32).at[:, :num_classes].set(b)

    return dict(
        w_bf16=w_bf16, w_patch=w_patch, b_pad=b_pad,
        D=D, Dpad=Dpad, Dp=Dp, Dp_raw=Dp_raw, Kp=Kp, tk=tk, tn=tn,
        num_classes=num_classes, channel_out=channel_out,
        patch_size=patch_size, input_size=input_size,
    )


# ------------- program kernel: prog_logits = tanh((1-mask)*p) @ w + b --------
# Batch-independent; re-run only when p changes, cached across microbatches.

def program_logits_kernel(p_ref, mask_ref, w_ref, b_ref, out_ref, acc_ref):
    # grid = (Kp // tn, Dpad // tk); reduction over D is the LAST grid axis.
    k = pl.program_id(1)

    @pl.when(k == 0)
    def _():
        acc_ref[...] = jnp.zeros_like(acc_ref)

    P = jnp.tanh((1.0 - mask_ref[...]) * p_ref[...])                 # (1, tk), EUP tanh
    acc_ref[...] += jnp.dot(P.astype(jnp.bfloat16), w_ref[...],
                            preferred_element_type=jnp.float32)      # (1, tn) f32 acc

    @pl.when(k == pl.num_programs(1) - 1)
    def _():
        out_ref[...] = acc_ref[...] + b_ref[...]


def compute_program_logits(p, mask, static):
    D, Dpad, Kp, tk, tn = (static[k] for k in ("D", "Dpad", "Kp", "tk", "tn"))
    p_flat = jnp.zeros((1, Dpad), jnp.float32).at[:, :D].set(p.reshape(1, D))
    mask_flat = jnp.zeros((1, Dpad), jnp.float32).at[:, :D].set(mask.reshape(1, D))

    return pl.pallas_call(
        program_logits_kernel,
        out_shape=jax.ShapeDtypeStruct((1, Kp), jnp.float32),
        grid=(Kp // tn, Dpad // tk),
        in_specs=[
            pl.BlockSpec((1, tk), lambda n, k: (0, k)),     # p
            pl.BlockSpec((1, tk), lambda n, k: (0, k)),     # mask
            pl.BlockSpec((tk, tn), lambda n, k: (k, n)),    # w (bf16, streamed)
            pl.BlockSpec((1, tn), lambda n, k: (0, n)),     # bias
        ],
        out_specs=pl.BlockSpec((1, tn), lambda n, k: (0, n)),
        scratch_shapes=[pltpu.VMEM((1, tn), jnp.float32)],
        compiler_params=pltpu.CompilerParams(
            dimension_semantics=("parallel", "arbitrary")),
    )(p_flat, mask_flat, static["w_bf16"], static["b_pad"])


# ----------------- hot per-batch kernel: x_patch @ w_patch + prog ------------
# P == 0 on the patch rows and the zero-padded image == 0 elsewhere, so
#   logits = x_patch_flat @ w[patch_rows] + (P_flat @ w + b)
# and the full weight matrix never enters the per-batch path.

def batch_logits_kernel(x_ref, wpatch_ref, prog_ref, out_ref):
    out_ref[...] = (jnp.dot(x_ref[...], wpatch_ref[...],
                            preferred_element_type=jnp.float32)
                    + prog_ref[...])


def programming_network_forward(x, p, mask, static, prog_logits=None):
    """ProgrammingNetwork.forward: model(x_to_X(x) + tanh((1 - mask) * p))."""
    if prog_logits is None:                      # recompute when p changes (training)
        prog_logits = compute_program_logits(p, mask, static)

    B = x.shape[0]
    C = static["channel_out"]
    ps = static["patch_size"]
    Dp, Dp_raw, Kp = static["Dp"], static["Dp_raw"], static["Kp"]
    tn = static["tn"]
    Bp = _round_up(max(B, 1), 16)                # sublane-multiple batch (bf16 packs 16)

    x_flat = jnp.broadcast_to(x, (B, C, ps, ps)).reshape(B, Dp_raw)
    x_pack = jnp.zeros((Bp, Dp), jnp.bfloat16).at[:B, :Dp_raw].set(
        x_flat.astype(jnp.bfloat16))

    logits_padded = pl.pallas_call(
        batch_logits_kernel,
        out_shape=jax.ShapeDtypeStruct((Bp, Kp), jnp.float32),
        grid=(Kp // tn,),
        in_specs=[
            pl.BlockSpec((Bp, Dp), lambda n: (0, 0)),       # x patch batch
            pl.BlockSpec((Dp, tn), lambda n: (0, n)),       # patch rows of w (bf16)
            pl.BlockSpec((1, tn), lambda n: (0, n)),        # prog_logits
        ],
        out_specs=pl.BlockSpec((Bp, tn), lambda n: (0, n)),
        compiler_params=pltpu.CompilerParams(
            dimension_semantics=("parallel",)),             # 2 TCs on v7x; free elsewhere
    )(x_pack, static["w_patch"], prog_logits)

    return logits_padded[:B, :static["num_classes"]]


# ------------------------------ main ------------------------------------------

if __name__ == "__main__":
    # Small shapes consistent with the module (scaled down from 224/28):
    batch_size = 2
    channel_out = 3
    input_size = 16     # image size expected by the (synthetic) pretrained model
    patch_size = 8      # size of the small target-domain image
    num_classes = 10

    key = jax.random.PRNGKey(0)
    k_p, k_x, k_w = jax.random.split(key, 3)

    # Parameters (deterministic init, mirrors __init__ shapes):
    p = jax.random.normal(k_p, (channel_out, input_size, input_size), jnp.float32)
    mask = get_mask(patch_size, input_size, channel_out, batch_size=1)[0]

    # Synthetic "pretrained model" params (flatten + linear head):
    D = channel_out * input_size * input_size
    w = 0.01 * jax.random.normal(k_w, (D, num_classes), jnp.float32)
    b = jnp.zeros((1, num_classes), jnp.float32)

    # Target-domain input: grayscale patch, expanded to 3 channels (as in x_to_X).
    x = jax.random.normal(k_x, (batch_size, 1, patch_size, patch_size), jnp.float32)

    # Weight-derived glue: computed ONCE (hoisted out of the forward).
    static = make_static_params(w, b, input_size, patch_size, channel_out, num_classes)

    logits = programming_network_forward(x, p, mask, static)
    logits = jax.block_until_ready(logits)

    # Pure-JAX reference mirroring the original module exactly.
    P_ref = jnp.tanh((1.0 - mask) * p)
    x_adv_ref = x_to_X(x, input_size, channel_out) + P_ref[None]
    logits_ref = x_adv_ref.reshape(batch_size, -1) @ w + b

    assert logits.shape == (batch_size, num_classes)
    # Tolerance loosened vs the pure-f32 version because weights/activations feed the
    # MXU in bf16 (f32 accumulation).
    assert jnp.allclose(logits, logits_ref, atol=2e-2, rtol=2e-2), (
        float(jnp.max(jnp.abs(logits - logits_ref))))
    print("KERNEL_OK")
</pallas_src>

<mosaic_0001>
module attributes {stable_mosaic.version = 11 : i64} {
  func.func @program_logits_kernel(%arg0: i32, %arg1: i32, %arg2: memref<1x256xf32, #tpu.memory_space<vmem>>, %arg3: memref<1x256xf32, #tpu.memory_space<vmem>>, %arg4: memref<256x128xbf16, #tpu.memory_space<vmem>>, %arg5: memref<1x128xf32, #tpu.memory_space<vmem>>, %arg6: memref<1x128xf32, #tpu.memory_space<vmem>>, %arg7: memref<1x128xf32, #tpu.memory_space<vmem>>) attributes {dimension_semantics = [#tpu.dimension_semantics<parallel>, #tpu.dimension_semantics<arbitrary>], iteration_bounds = array<i64: 1, 3>, scalar_prefetch = 0 : i64, scratch_operands = 1 : i64, tpu.core_type = #tpu.core_type<tc>, window_params = [{transform_indices = @transform_0, window_bounds = array<i64: 1, 256>}, {transform_indices = @transform_1, window_bounds = array<i64: 1, 256>}, {transform_indices = @transform_2, window_bounds = array<i64: 256, 128>}, {transform_indices = @transform_3, window_bounds = array<i64: 1, 128>}, {transform_indices = @transform_4, window_bounds = array<i64: 1, 128>}]} {
    %c0_i32 = arith.constant 0 : i32
    %0 = arith.cmpi eq, %arg1, %c0_i32 : i32
    %1 = arith.extui %0 : i1 to i32
    %c0_i32_0 = arith.constant 0 : i32
    %2 = arith.cmpi ne, %1, %c0_i32_0 : i32
    scf.if %2 {
      %cst_12 = arith.constant 0.000000e+00 : f32
      %18 = vector.broadcast %cst_12 : f32 to vector<1x128xf32>
      %c0_13 = arith.constant 0 : index
      %c0_14 = arith.constant 0 : index
      %19 = vector.load %arg7[%c0_13, %c0_14] : memref<1x128xf32, #tpu.memory_space<vmem>>, vector<1x128xf32>
      tpu.vector_store %arg7[%c0_13, %c0_14], %18 {strides = array<i32>} : memref<1x128xf32, #tpu.memory_space<vmem>>, vector<1x128xf32>,
    } else {
    }
    %c0 = arith.constant 0 : index
    %c0_1 = arith.constant 0 : index
    %3 = vector.load %arg3[%c0, %c0_1] : memref<1x256xf32, #tpu.memory_space<vmem>>, vector<1x256xf32>
    %cst = arith.constant 1.000000e+00 : f32
    %4 = vector.broadcast %cst : f32 to vector<1x256xf32>
    %5 = arith.subf %4, %3 : vector<1x256xf32>
    %c0_2 = arith.constant 0 : index
    %c0_3 = arith.constant 0 : index
    %6 = vector.load %arg2[%c0_2, %c0_3] : memref<1x256xf32, #tpu.memory_space<vmem>>, vector<1x256xf32>
    %7 = arith.mulf %5, %6 : vector<1x256xf32>
    %8 = math.tanh %7 : vector<1x256xf32>
    %c0_4 = arith.constant 0 : index
    %c0_5 = arith.constant 0 : index
    %9 = vector.load %arg7[%c0_4, %c0_5] : memref<1x128xf32, #tpu.memory_space<vmem>>, vector<1x128xf32>
    %10 = arith.truncf %8 : vector<1x256xf32> to vector<1x256xbf16>
    %c0_6 = arith.constant 0 : index
    %c0_7 = arith.constant 0 : index
    %11 = vector.load %arg4[%c0_6, %c0_7] : memref<256x128xbf16, #tpu.memory_space<vmem>>, vector<256x128xbf16>
    %cst_8 = arith.constant dense<0.000000e+00> : vector<1x128xf32>
    %12 = tpu.matmul %10, %11, %cst_8 {dimension_numbers = #tpu.dot_dimension_numbers<[1], [0], [0], [1], [0, 0, 1, 1], [], []>} : vector<1x256xbf16>, vector<256x128xbf16>, vector<1x128xf32> -> vector<1x128xf32>
    %13 = arith.addf %9, %12 : vector<1x128xf32>
    %c0_9 = arith.constant 0 : index
    %c0_10 = arith.constant 0 : index
    %14 = vector.load %arg7[%c0_9, %c0_10] : memref<1x128xf32, #tpu.memory_space<vmem>>, vector<1x128xf32>
    tpu.vector_store %arg7[%c0_9, %c0_10], %13 {strides = array<i32>} : memref<1x128xf32, #tpu.memory_space<vmem>>, vector<1x128xf32>,
    %c2_i32 = arith.constant 2 : i32
    %15 = arith.cmpi eq, %arg1, %c2_i32 : i32
    %16 = arith.extui %15 : i1 to i32
    %c0_i32_11 = arith.constant 0 : i32
    %17 = arith.cmpi ne, %16, %c0_i32_11 : i32
    scf.if %17 {
      %c0_12 = arith.constant 0 : index
      %c0_13 = arith.constant 0 : index
      %18 = vector.load %arg7[%c0_12, %c0_13] : memref<1x128xf32, #tpu.memory_space<vmem>>, vector<1x128xf32>
      %c0_14 = arith.constant 0 : index
      %c0_15 = arith.constant 0 : index
      %19 = vector.load %arg5[%c0_14, %c0_15] : memref<1x128xf32, #tpu.memory_space<vmem>>, vector<1x128xf32>
      %20 = arith.addf %18, %19 : vector<1x128xf32>
      %c0_16 = arith.constant 0 : index
      %c0_17 = arith.constant 0 : index
      %21 = vector.load %arg6[%c0_16, %c0_17] : memref<1x128xf32, #tpu.memory_space<vmem>>, vector<1x128xf32>
      tpu.vector_store %arg6[%c0_16, %c0_17], %20 {strides = array<i32>} : memref<1x128xf32, #tpu.memory_space<vmem>>, vector<1x128xf32>,
    } else {
    }
    return
  }
  func.func @transform_0(%arg0: i32, %arg1: i32) -> (i32, i32) {
    %c0_i32 = arith.constant 0 : i32
    %c0_i32_0 = arith.constant 0 : i32
    return %c0_i32, %arg1 : i32, i32
  }
  func.func @transform_1(%arg0: i32, %arg1: i32) -> (i32, i32) {
    %c0_i32 = arith.constant 0 : i32
    %c0_i32_0 = arith.constant 0 : i32
    return %c0_i32, %arg1 : i32, i32
  }
  func.func @transform_2(%arg0: i32, %arg1: i32) -> (i32, i32) {
    %c0_i32 = arith.constant 0 : i32
    return %arg1, %arg0 : i32, i32
  }
  func.func @transform_3(%arg0: i32, %arg1: i32) -> (i32, i32) {
    %c0_i32 = arith.constant 0 : i32
    %c0_i32_0 = arith.constant 0 : i32
    return %c0_i32, %arg0 : i32, i32
  }
  func.func @transform_4(%arg0: i32, %arg1: i32) -> (i32, i32) {
    %c0_i32 = arith.constant 0 : i32
    %c0_i32_0 = arith.constant 0 : i32
    return %c0_i32, %arg0 : i32, i32
  }
}

</mosaic_0001>

<llo_original>
// kernel: tpu_custom_call.1
$region0: #{tpu_custom_call.1}
  #allocation0 [shape = 'u32[]', space=smem, size = 0x4, offset = 0x4, fixed_abs, tag = 'smem constant byte address 0x4 - core index']
  #allocation1 [shape = 'u32[144,128]{1,0:T(1,128)}', space=vmem, size = 0x12000, scoped, tag = 'internal scratch']
  #allocation2 [shape = 'f32[1,128]{1,0:T(1,128)}', space=vmem, size = 0x200, scoped, tag = 'scratch operand']
  %s0 = inlined_call_operand.hbm [shape: f32[1,768], index: 0, kind: input, shape index: {}]
  %s1 = inlined_call_operand.hbm [shape: f32[1,768], index: 1, kind: input, shape index: {}]
  %s2 = inlined_call_operand.hbm [shape: bf16[768,128], index: 2, kind: input, shape index: {}]
  %s3 = inlined_call_operand.vmem [shape: f32[1,128], index: 3, kind: input, shape index: {}]
  %s4 = inlined_call_operand.hbm [shape: f32[1,128], index: 4, kind: output, shape index: {}]
  %s5 = sld [smem:[#allocation0]]
  $region69: #{tpu_custom_call.1} parent=0
    _
  %s7 = ssub.s32 1, %s5
  %s8 = scalar_select 0, %s7, %s5
  $region1: #{tpu_custom_call.1} parent=0
    #allocation3 [shape = 'u8[2048]{0}', space=vmem, size = 0x800, scoped, tag = 'input window, operand 0']
    #allocation4 [shape = 's32[2]{0}', space=sflag, size = 0x8, scoped, tag = 'scoped memory for tpu_custom_call.1']
    #allocation5 [shape = 's32[2]{0}', space=sflag, size = 0x8, scoped, tag = 'scoped memory for tpu_custom_call.1']
    #allocation6 [shape = 'u8[2048]{0}', space=vmem, size = 0x800, scoped, tag = 'input window, operand 1']
    #allocation7 [shape = 's32[2]{0}', space=sflag, size = 0x8, scoped, tag = 'scoped memory for tpu_custom_call.1']
    #allocation8 [shape = 'u8[131072]{0}', space=vmem, size = 0x20000, scoped, tag = 'input window, operand 2']
    #allocation9 [shape = 'u8[512]{0}', space=vmem, size = 0x400, scoped, tag = 'output window, operand 0, single buffered']
    %9 = vsyncpa [#allocation4], 0
    %s10 = scalar_lea.sflag [#allocation4], 1
    %11 = vsyncpa %s10, 0
    %12 = vsyncpa [#allocation7], 0
    %s13 = scalar_lea.sflag [#allocation7], 1
    %14 = vsyncpa %s13, 0
    %15 = vsyncpa [#allocation5], 0
    loop: start=0, step=1, limit=5
    $region2: #{tpu_custom_call.1} parent=1 // loop_pre_header
      _
    $region3: #{tpu_custom_call.1} parent=1 // loop_header
      %s17 = sphi 0, %s21
      %p18 = scmp.ge.s32.totalorder %s17, 5
      %s24 = sphi 0, %s36
      %s25 = sphi 0, %s32
      %s26 = sphi 0, %s24
      %s27 = sphi 0, %s25
      %s28 = sphi 0, %s26
      %s29 = sphi 0, %s27
      %s39 = sphi 0, %s41
      %s42 = sphi 0, %s39
      %s43 = sphi 0, %s42
      %s59 = sphi 0, %s43
      %s65 = sphi 0, %s67
      %s68 = sphi 0, %s65
      %s69 = sphi 0, %s68
      %s85 = sphi 0, %s69
      %s93 = sphi 0, %s95
      %s96 = sphi 0, %s93
      %s97 = sphi 0, %s96
      %s113 = sphi 0, %s97
      %s119 = sphi 0, %s121
      %s122 = sphi 0, %s119
      %s123 = sphi 0, %s122
      %s139 = sphi 0, %s123
      %s145 = sphi 0, %s147
      %s148 = sphi 0, %s145
      %s149 = sphi 0, %s148
      %s165 = sphi 0, %s149
    $region4: #{tpu_custom_call.1} parent=1 // loop_header_branch
      %20 = sbr.rel (%p18) target = $region8
    $region5: #{tpu_custom_call.1} parent=1 // loop_body
      %s22 = ssub.s32 %s17, 1
      %s23 = ssub.s32 %s17, 2
      %s30 = sadd.s32 1, %s25
      %p31 = scmp.ge.s32.totalorder %s30, 3
      %s32 = scalar_select %p31, 0, %s30
      %s33 = sadd.s32 1, %s24
      %s34 = scalar_select %p31, %s33, %s24
      %p35 = scmp.ge.s32.totalorder %s34, 1
      %s36 = scalar_select %p35, 0, %s34
      %s37 = ssub.s32 %s25, %s32
      %p38 = scmp.eq.s32.totalorder %s37, 0
      %s40 = sadd.s32 %s39, 1
      %s41 = scalar_select %p38, %s39, %s40
      %p44 = pneg %p38
      %p45 = scmp.eq.s32.totalorder %s17, 2
      %p46 = por %p44, %p45
      %p47 = scmp.ne.s32.totalorder %s39, %s42
      %p48 = scmp.eq.s32.totalorder %s17, 0
      %p49 = por %p47, %p48
      %p50 = scmp.ne.s32.totalorder %s39, %s42
      %p51 = scmp.eq.s32.totalorder %s22, 2
      %p52 = por %p50, %p51
      %p53 = scmp.ne.s32.totalorder %s42, %s43
      %p54 = scmp.eq.s32.totalorder %s22, 0
      %p55 = por %p53, %p54
      %p56 = scmp.ne.s32.totalorder %s42, %s43
      %p57 = scmp.eq.s32.totalorder %s23, 2
      %p58 = por %p56, %p57
      %p60 = scmp.ne.s32.totalorder %s43, %s59
      %p61 = scmp.eq.s32.totalorder %s23, 0
      %p62 = por %p60, %p61
      %s63 = ssub.s32 %s25, %s32
      %p64 = scmp.eq.s32.totalorder %s63, 0
      %s66 = sadd.s32 %s65, 1
      %s67 = scalar_select %p64, %s65, %s66
      %p70 = pneg %p64
      %p71 = scmp.eq.s32.totalorder %s17, 2
      %p72 = por %p70, %p71
      %p73 = scmp.ne.s32.totalorder %s65, %s68
      %p74 = scmp.eq.s32.totalorder %s17, 0
      %p75 = por %p73, %p74
      %p76 = scmp.ne.s32.totalorder %s65, %s68
      %p77 = scmp.eq.s32.totalorder %s22, 2
      %p78 = por %p76, %p77
      %p79 = scmp.ne.s32.totalorder %s68, %s69
      %p80 = scmp.eq.s32.totalorder %s22, 0
      %p81 = por %p79, %p80
      %p82 = scmp.ne.s32.totalorder %s68, %s69
      %p83 = scmp.eq.s32.totalorder %s23, 2
      %p84 = por %p82, %p83
      %p86 = scmp.ne.s32.totalorder %s69, %s85
      %p87 = scmp.eq.s32.totalorder %s23, 0
      %p88 = por %p86, %p87
      %s89 = ssub.s32 %s25, %s32
      %s90 = ssub.s32 %s24, %s36
      %s91 = sor.u32 %s89, %s90
      %p92 = scmp.eq.s32.totalorder %s91, 0
      %s94 = sadd.s32 %s93, 1
      %s95 = scalar_select %p92, %s93, %s94
      %p98 = pneg %p92
      %p99 = scmp.eq.s32.totalorder %s17, 2
      %p100 = por %p98, %p99
      %p101 = scmp.ne.s32.totalorder %s93, %s96
      %p102 = scmp.eq.s32.totalorder %s17, 0
      %p103 = por %p101, %p102
      %p104 = scmp.ne.s32.totalorder %s93, %s96
      %p105 = scmp.eq.s32.totalorder %s22, 2
      %p106 = por %p104, %p105
      %p107 = scmp.ne.s32.totalorder %s96, %s97
      %p108 = scmp.eq.s32.totalorder %s22, 0
      %p109 = por %p107, %p108
      %p110 = scmp.ne.s32.totalorder %s96, %s97
      %p111 = scmp.eq.s32.totalorder %s23, 2
      %p112 = por %p110, %p111
      %p114 = scmp.ne.s32.totalorder %s97, %s113
      %p115 = scmp.eq.s32.totalorder %s23, 0
      %p116 = por %p114, %p115
      %s117 = ssub.s32 %s24, %s36
      %p118 = scmp.eq.s32.totalorder %s117, 0
      %s120 = sadd.s32 %s119, 1
      %s121 = scalar_select %p118, %s119, %s120
      %p124 = pneg %p118
      %p125 = scmp.eq.s32.totalorder %s17, 2
      %p126 = por %p124, %p125
      %p127 = scmp.ne.s32.totalorder %s119, %s122
      %p128 = scmp.eq.s32.totalorder %s17, 0
      %p129 = por %p127, %p128
      %p130 = scmp.ne.s32.totalorder %s119, %s122
      %p131 = scmp.eq.s32.totalorder %s22, 2
      %p132 = por %p130, %p131
      %p133 = scmp.ne.s32.totalorder %s122, %s123
      %p134 = scmp.eq.s32.totalorder %s22, 0
      %p135 = por %p133, %p134
      %p136 = scmp.ne.s32.totalorder %s122, %s123
      %p137 = scmp.eq.s32.totalorder %s23, 2
      %p138 = por %p136, %p137
      %p140 = scmp.ne.s32.totalorder %s123, %s139
      %p141 = scmp.eq.s32.totalorder %s23, 0
      %p142 = por %p140, %p141
      %s143 = ssub.s32 %s24, %s36
      %p144 = scmp.eq.s32.totalorder %s143, 0
      %s146 = sadd.s32 %s145, 1
      %s147 = scalar_select %p144, %s145, %s146
      %p150 = pneg %p144
      %p151 = scmp.eq.s32.totalorder %s17, 2
      %p152 = por %p150, %p151
      %p153 = scmp.ne.s32.totalorder %s145, %s148
      %p154 = scmp.eq.s32.totalorder %s17, 0
      %p155 = por %p153, %p154
      %p156 = scmp.ne.s32.totalorder %s145, %s148
      %p157 = scmp.eq.s32.totalorder %s22, 2
      %p158 = por %p156, %p157
      %p159 = scmp.ne.s32.totalorder %s148, %s149
      %p160 = scmp.eq.s32.totalorder %s22, 0
      %p161 = por %p159, %p160
      %p162 = scmp.ne.s32.totalorder %s148, %s149
      %p163 = scmp.eq.s32.totalorder %s23, 2
      %p164 = por %p162, %p163
      %p166 = scmp.ne.s32.totalorder %s149, %s165
      %p167 = scmp.eq.s32.totalorder %s23, 0
      %p168 = por %p166, %p167
      %p169 = scmp.le.s32.totalorder 1, %s17
      %p170 = scmp.lt.s32.totalorder %s17, 4
      %p171 = pnand %p169, %p170
      %p172 = pneg %p171
      // Predicated region
      $region9: #{tpu_custom_call.1} parent=5 // pred_check
        _
      $region10: #{tpu_custom_call.1} parent=5 // pred_check_branch
        %174 = sbr.rel (%p171) target = $region12
      $region11: #{tpu_custom_call.1} parent=5 // pred_region
        %s175 = ssub.s32 %s17, 1
        // Predicated region
        $region13: #{tpu_custom_call.1} parent=11 // pred_check
          %p176 = pneg %p135
        $region14: #{tpu_custom_call.1} parent=11 // pred_check_branch
          %178 = sbr.rel (%p176) target = $region16
        $region15: #{tpu_custom_call.1} parent=11 // pred_region
          %p179 = scmp.lt.s32.totalorder %s26, 0
          %s180 = scalar_select %p179, %s26, 0
          %s181 = scalar_lea.vmem %s3, %s180
        $region16: #{tpu_custom_call.1} parent=11 // pred_fallthru
          _
      $region12: #{tpu_custom_call.1} parent=5 // pred_fallthru
        _
      %p182 = scmp.lt.s32.totalorder %s17, 3
      // Predicated region
      $region17: #{tpu_custom_call.1} parent=5 // pred_check
        %p183 = pneg %p182
      $region18: #{tpu_custom_call.1} parent=5 // pred_check_branch
        %185 = sbr.rel (%p183) target = $region20
      $region19: #{tpu_custom_call.1} parent=5 // pred_region
        // Predicated region
        $region21: #{tpu_custom_call.1} parent=19 // pred_check
          %p186 = pneg %p49
        $region22: #{tpu_custom_call.1} parent=19 // pred_check_branch
          %188 = sbr.rel (%p186) target = $region24
        $region23: #{tpu_custom_call.1} parent=19 // pred_region
          %s189 = sand.u32 %s39, 1
          %s190 = scalar_lea.sflag [#allocation4], %s189
          %s191 = sand.u32 %s39, 1
          %s192 = smul.addr %s191, 2
          %s193 = scalar_lea.vmem [#allocation3], %s192
          %s194 = smul.u32 2, %s25
          %s196 = ssub.s32 32, 32
          %197 = vsyncadd %s190, %s196
          %s198 = smul.addr %s194, 16
          %s199 = scalar_lea.hbm %s0, %s198
          %s201 = sshll.u32 %s193, 4
          %s202 = int_to_ptr.vmem [resolvable:$true] %s201
          %204 = dma.hbm_to_vmem [thread:$0]  %s199, 32, %s202, %s190
        $region24: #{tpu_custom_call.1} parent=19 // pred_fallthru
          _
        // Predicated region
        $region25: #{tpu_custom_call.1} parent=19 // pred_check
          %p205 = pneg %p75
        $region26: #{tpu_custom_call.1} parent=19 // pred_check_branch
          %207 = sbr.rel (%p205) target = $region28
        $region27: #{tpu_custom_call.1} parent=19 // pred_region
          %s208 = sand.u32 %s17, 1
          %s209 = scalar_lea.sflag [#allocation7], %s208
          %s210 = sand.u32 %s65, 1
          %s211 = smul.addr %s210, 2
          %s212 = scalar_lea.vmem [#allocation6], %s211
          %s213 = smul.u32 2, %s25
          %s215 = ssub.s32 32, 32
          %216 = vsyncadd %s209, %s215
          %s217 = smul.addr %s213, 16
          %s218 = scalar_lea.hbm %s1, %s217
          %s220 = sshll.u32 %s212, 4
          %s221 = int_to_ptr.vmem [resolvable:$true] %s220
          %223 = dma.hbm_to_vmem [thread:$0]  %s218, 32, %s221, %s209
        $region28: #{tpu_custom_call.1} parent=19 // pred_fallthru
          _
        // Predicated region
        $region29: #{tpu_custom_call.1} parent=19 // pred_check
          %p224 = pneg %p103
        $region30: #{tpu_custom_call.1} parent=19 // pred_check_branch
          %226 = sbr.rel (%p224) target = $region32
        $region31: #{tpu_custom_call.1} parent=19 // pred_region
          %s227 = sand.u32 %s17, 1
          %s228 = scalar_lea.sflag [#allocation7], %s227
          %s229 = sand.u32 %s93, 1
          %s230 = smul.addr %s229, 128
          %s231 = scalar_lea.vmem [#allocation8], %s230
          %s232 = smul.u32 32, %s25
          %s234 = ssub.s32 2048, 2048
          %235 = vsyncadd %s228, %s234
          %s236 = sadd.s32 %s24, %s232
          %s237 = smul.addr %s236, 64
          %s238 = scalar_lea.hbm %s2, %s237
          %s239 = sshll.u32 %s231, 4
          %s240 = int_to_ptr.vmem [resolvable:$true] %s239
          %245 = dma.hbm_to_vmem [thread:$0]  %s238, 2048, %s240, %s228, 64, 64, 4
        $region32: #{tpu_custom_call.1} parent=19 // pred_fallthru
          _
      $region20: #{tpu_custom_call.1} parent=5 // pred_fallthru
        _
      %p246 = scmp.le.s32.totalorder 1, %s17
      %p247 = scmp.lt.s32.totalorder %s17, 4
      %p248 = pnand %p246, %p247
      %p249 = pneg %p248
      // Predicated region
      $region33: #{tpu_custom_call.1} parent=5 // pred_check
        _
      $region34: #{tpu_custom_call.1} parent=5 // pred_check_branch
        %251 = sbr.rel (%p248) target = $region36
      $region35: #{tpu_custom_call.1} parent=5 // pred_region
        %s252 = ssub.s32 %s17, 1
        %s253 = sand.u32 %s42, 1
        %s254 = scalar_lea.sflag [#allocation4], %s253
        %s255 = sand.u32 %s42, 1
        %s256 = smul.addr %s255, 2
        %s257 = scalar_lea.vmem [#allocation3], %s256
        // Predicated region
        $region37: #{tpu_custom_call.1} parent=35 // pred_check
          %p258 = pneg %p55
        $region38: #{tpu_custom_call.1} parent=35 // pred_check_branch
          %260 = sbr.rel (%p258) target = $region40
        $region39: #{tpu_custom_call.1} parent=35 // pred_region
          %261 = dma.done %s254, 32
        $region40: #{tpu_custom_call.1} parent=35 // pred_fallthru
          _
        %s262 = sand.u32 %s22, 1
        %s263 = scalar_lea.sflag [#allocation7], %s262
        %s264 = sand.u32 %s68, 1
        %s265 = smul.addr %s264, 2
        %s266 = scalar_lea.vmem [#allocation6], %s265
        // Predicated region
        $region41: #{tpu_custom_call.1} parent=35 // pred_check
          %p267 = pneg %p81
        $region42: #{tpu_custom_call.1} parent=35 // pred_check_branch
          %269 = sbr.rel (%p267) target = $region44
        $region43: #{tpu_custom_call.1} parent=35 // pred_region
          %270 = dma.done %s263, 32
        $region44: #{tpu_custom_call.1} parent=35 // pred_fallthru
          _
        %s271 = sand.u32 %s22, 1
        %s272 = scalar_lea.sflag [#allocation7], %s271
        %s273 = sand.u32 %s96, 1
        %s274 = smul.addr %s273, 128
        %s275 = scalar_lea.vmem [#allocation8], %s274
        // Predicated region
        $region45: #{tpu_custom_call.1} parent=35 // pred_check
          %p276 = pneg %p109
        $region46: #{tpu_custom_call.1} parent=35 // pred_check_branch
          %278 = sbr.rel (%p276) target = $region48
        $region47: #{tpu_custom_call.1} parent=35 // pred_region
          %279 = dma.done %s272, 2048
        $region48: #{tpu_custom_call.1} parent=35 // pred_fallthru
          _
        %s280 = sand.u32 %s42, 1
        %s281 = scalar_lea.sflag [#allocation4], %s280
        %s282 = sand.u32 %s42, 1
        %s283 = smul.addr %s282, 2
        %s284 = scalar_lea.vmem [#allocation3], %s283
        %p285 = pneg %p55
        %p286 = pneg %p52
        %s287 = sand.u32 %s22, 1
        %s288 = scalar_lea.sflag [#allocation7], %s287
        %s289 = sand.u32 %s68, 1
        %s290 = smul.addr %s289, 2
        %s291 = scalar_lea.vmem [#allocation6], %s290
        %p292 = pneg %p81
        %p293 = pneg %p78
        %s294 = sand.u32 %s22, 1
        %s295 = scalar_lea.sflag [#allocation7], %s294
        %s296 = sand.u32 %s96, 1
        %s297 = smul.addr %s296, 128
        %s298 = scalar_lea.vmem [#allocation8], %s297
        %p299 = pneg %p109
        %p300 = pneg %p106
        %p301 = scmp.lt.s32.totalorder %s26, 0
        %s302 = scalar_select %p301, %s26, 0
        %s303 = scalar_lea.vmem %s3, %s302
        %p304 = pneg %p135
        %p305 = pneg %p132
        %p306 = pneg %p161
        %p307 = pneg %p158
        %s308 = smul.u32 2, %s27
        %s309 = smul.u32 2, %s27
        %s310 = smul.u32 32, %s27
        %p311 = scmp.lt.s32.totalorder %s26, 0
        %s312 = scalar_select %p311, %s26, 0
        %s313 = scalar_lea.vmem %s3, %s312
        %p315 = scmp.eq.s32.totalorder %s27, 0
        // Predicated region
        $region49: #{tpu_custom_call.1} parent=35 // pred_check
          %p316 = pneg %p315
        $region50: #{tpu_custom_call.1} parent=35 // pred_check_branch
          %318 = sbr.rel (%p316) target = $region52
        $region51: #{tpu_custom_call.1} parent=35 // pred_region
          %319 = vst [vmem:[#allocation2] sm:$0x1] 0.0
        $region52: #{tpu_custom_call.1} parent=35 // pred_fallthru
          _
        %v320 = vld [vmem:[%s266] sm:$0x3]
        %v321 = vsub.f32 1.0, %v320
        %v322 = vld [vmem:[%s257] sm:$0x3]
        %v323 = vmul.f32 %v321, %v322
        %v324 = vtanh.pop %v323
        %v325 = vld [vmem:[#allocation2] sm:$0x1]
        %v327 = vlaneseq
        %v328 = vshrl.u32 %v327, 7
        %v329 = vsub.s32 0, %v328
        %v330 = vrot.slane %v324, %v329
        %v331 = vlaneseq
        %v332 = vshrl.u32 %v331, 7
        %v333 = vsub.s32 1, %v332
        %v334 = vrot.slane %v324, %v333
        %v337 = vpack.c.bf16 %v330, %v330
        %v338 = vpack.c.bf16 %v334, %v334
        %v339 = vld [vmem:[%s275] sm:$0xf]
        %v340 = vld [vmem:[%s275 + $0x4] sm:$0xf]
        %v341 = vld [vmem:[%s275 + $0x8] sm:$0xf]
        %v342 = vld [vmem:[%s275 + $0xc] sm:$0xf]
        %v343 = vld [vmem:[%s275 + $0x10] sm:$0xf]
        %v344 = vld [vmem:[%s275 + $0x14] sm:$0xf]
        %v345 = vld [vmem:[%s275 + $0x18] sm:$0xf]
        %v346 = vld [vmem:[%s275 + $0x1c] sm:$0xf]
        %v347 = vld [vmem:[%s275 + $0x20] sm:$0xf]
        %v348 = vld [vmem:[%s275 + $0x24] sm:$0xf]
        %v349 = vld [vmem:[%s275 + $0x28] sm:$0xf]
        %v350 = vld [vmem:[%s275 + $0x2c] sm:$0xf]
        %v351 = vld [vmem:[%s275 + $0x30] sm:$0xf]
        %v352 = vld [vmem:[%s275 + $0x34] sm:$0xf]
        %v353 = vld [vmem:[%s275 + $0x38] sm:$0xf]
        %v354 = vld [vmem:[%s275 + $0x3c] sm:$0xf]
        %v355 = vld [vmem:[%s275 + $0x40] sm:$0xf]
        %v356 = vld [vmem:[%s275 + $0x44] sm:$0xf]
        %v357 = vld [vmem:[%s275 + $0x48] sm:$0xf]
        %v358 = vld [vmem:[%s275 + $0x4c] sm:$0xf]
        %v359 = vld [vmem:[%s275 + $0x50] sm:$0xf]
        %v360 = vld [vmem:[%s275 + $0x54] sm:$0xf]
        %v361 = vld [vmem:[%s275 + $0x58] sm:$0xf]
        %v362 = vld [vmem:[%s275 + $0x5c] sm:$0xf]
        %v363 = vld [vmem:[%s275 + $0x60] sm:$0xf]
        %v364 = vld [vmem:[%s275 + $0x64] sm:$0xf]
        %v365 = vld [vmem:[%s275 + $0x68] sm:$0xf]
        %v366 = vld [vmem:[%s275 + $0x6c] sm:$0xf]
        %v367 = vld [vmem:[%s275 + $0x70] sm:$0xf]
        %v368 = vld [vmem:[%s275 + $0x74] sm:$0xf]
        %v369 = vld [vmem:[%s275 + $0x78] sm:$0xf]
        %v370 = vld [vmem:[%s275 + $0x7c] sm:$0xf]
        %v403 = vunpack.c.l.b16 %v339
        %v404 = vunpack.c.l.b16 %v340
        %v405 = vunpack.c.l.b16 %v341
        %v406 = vunpack.c.l.b16 %v342
        %v407 = vunpack.c.l.b16 %v343
        %v408 = vunpack.c.l.b16 %v344
        %v409 = vunpack.c.l.b16 %v345
        %v410 = vunpack.c.l.b16 %v346
        %v411 = vunpack.c.l.b16 %v347
        %v412 = vunpack.c.l.b16 %v348
        %v413 = vunpack.c.l.b16 %v349
        %v414 = vunpack.c.l.b16 %v350
        %v415 = vunpack.c.l.b16 %v351
        %v416 = vunpack.c.l.b16 %v352
        %v417 = vunpack.c.l.b16 %v353
        %v418 = vunpack.c.l.b16 %v354
        %v419 = vunpack.c.l.b16 %v355
        %v420 = vunpack.c.l.b16 %v356
        %v421 = vunpack.c.l.b16 %v357
        %v422 = vunpack.c.l.b16 %v358
        %v423 = vunpack.c.l.b16 %v359
        %v424 = vunpack.c.l.b16 %v360
        %v425 = vunpack.c.l.b16 %v361
        %v426 = vunpack.c.l.b16 %v362
        %v427 = vunpack.c.l.b16 %v363
        %v428 = vunpack.c.l.b16 %v364
        %v429 = vunpack.c.l.b16 %v365
        %v430 = vunpack.c.l.b16 %v366
        %v431 = vunpack.c.l.b16 %v367
        %v432 = vunpack.c.l.b16 %v368
        %v433 = vunpack.c.l.b16 %v369
        %v434 = vunpack.c.l.b16 %v370
        %v435 = vpack.c.b16 %v404, %v403
        %v436 = vpack.c.b16 %v406, %v405
        %v437 = vpack.c.b16 %v408, %v407
        %v438 = vpack.c.b16 %v410, %v409
        %v439 = vpack.c.b16 %v412, %v411
        %v440 = vpack.c.b16 %v414, %v413
        %v441 = vpack.c.b16 %v416, %v415
        %v442 = vpack.c.b16 %v418, %v417
        %v443 = vpack.c.b16 %v420, %v419
        %v444 = vpack.c.b16 %v422, %v421
        %v445 = vpack.c.b16 %v424, %v423
        %v446 = vpack.c.b16 %v426, %v425
        %v447 = vpack.c.b16 %v428, %v427
        %v448 = vpack.c.b16 %v430, %v429
        %v449 = vpack.c.b16 %v432, %v431
        %v450 = vpack.c.b16 %v434, %v433
        %467 = vmatprep.subr.bf16.mxu0 0
        %468 = vmatpush1.bf16.msra.mxu0 %v442
        %469 = vmatprep.subr.bf16.mxu0 0
        %470 = vmatpush1.bf16.msra.mxu0 %v441
        %471 = vmatprep.subr.bf16.mxu0 0
        %472 = vmatpush1.bf16.msra.mxu0 %v440
        %473 = vmatprep.subr.bf16.mxu0 0
        %474 = vmatpush1.bf16.msra.mxu0 %v439
        %475 = vmatprep.subr.bf16.mxu0 0
        %476 = vmatpush1.bf16.msra.mxu0 %v438
        %477 = vmatprep.subr.bf16.mxu0 0
        %478 = vmatpush1.bf16.msra.mxu0 %v437
        %479 = vmatprep.subr.bf16.mxu0 0
        %480 = vmatpush1.bf16.msra.mxu0 %v436
        %481 = vmatprep.subr.bf16.mxu0 0
        %482 = vmatpush1.bf16.msra.mxu0 %v435
        %483 = vmatprep.subr.bf16.mxu0 0
        %484 = vmatpush2.bf16.msra.mxu0 %v450
        %485 = vmatprep.subr.bf16.mxu0 0
        %486 = vmatpush2.bf16.msra.mxu0 %v449
        %487 = vmatprep.subr.bf16.mxu0 0
        %488 = vmatpush2.bf16.msra.mxu0 %v448
        %489 = vmatprep.subr.bf16.mxu0 0
        %490 = vmatpush2.bf16.msra.mxu0 %v447
        %491 = vmatprep.subr.bf16.mxu0 0
        %492 = vmatpush2.bf16.msra.mxu0 %v446
        %493 = vmatprep.subr.bf16.mxu0 0
        %494 = vmatpush2.bf16.msra.mxu0 %v445
        %495 = vmatprep.subr.bf16.mxu0 0
        %496 = vmatpush2.bf16.msra.mxu0 %v444
        %497 = vmatprep.subr.bf16.mxu0 0
        %498 = vmatpush2.bf16.msra.mxu0 %v443
        %499 = vmatprep.mubr.bf16.mxu0 %v338
        %500 = vmatmul.mubr.bf16.gmra.mxu0 %v337
        %v501 = vpop.f32.mrf.mxu0
        %v502 = vadd.f32 0.0, %v501
        %v503 = vpop.f32.mrf.mxu0
        %v504 = vpop.f32.mrf.mxu0
        %v505 = vpop.f32.mrf.mxu0
        %506 = vdwg.mxu0
        %v507 = vadd.f32 %v325, %v502
        %508 = vst [vmem:[#allocation2] sm:$0x1] %v507
        %p509 = scmp.eq.s32.totalorder %s27, 2
        // Predicated region
        $region53: #{tpu_custom_call.1} parent=35 // pred_check
          %p510 = pneg %p509
        $region54: #{tpu_custom_call.1} parent=35 // pred_check_branch
          %512 = sbr.rel (%p510) target = $region56
        $region55: #{tpu_custom_call.1} parent=35 // pred_region
          %v513 = vld [vmem:[#allocation2] sm:$0x1]
          %v514 = vld [vmem:[%s313] sm:$0x1]
          %v515 = vadd.f32 %v513, %v514
          %516 = vst [vmem:[#allocation9] sm:$0x1] %v515
        $region56: #{tpu_custom_call.1} parent=35 // pred_fallthru
          _
        // Predicated region
        $region57: #{tpu_custom_call.1} parent=35 // pred_check
          %p517 = pneg %p158
        $region58: #{tpu_custom_call.1} parent=35 // pred_check_branch
          %519 = sbr.rel (%p517) target = $region60
        $region59: #{tpu_custom_call.1} parent=35 // pred_region
          %s521 = ssub.s32 16, 16
          %522 = vsyncadd [#allocation5], %s521
          %s523 = smul.addr %s26, 16
          %s524 = scalar_lea.hbm %s4, %s523
          %s526 = sshll.u32 [#allocation9], 4
          %s527 = int_to_ptr.vmem [resolvable:$true] %s526
          %529 = dma.vmem_to_hbm [thread:$0]  %s527, 16, %s524, [#allocation5]
        $region60: #{tpu_custom_call.1} parent=35 // pred_fallthru
          _
        // Predicated region
        $region61: #{tpu_custom_call.1} parent=35 // pred_check
          %p530 = pneg %p158
        $region62: #{tpu_custom_call.1} parent=35 // pred_check_branch
          %532 = sbr.rel (%p530) target = $region64
        $region63: #{tpu_custom_call.1} parent=35 // pred_region
          %533 = dma.done [#allocation5], 16
        $region64: #{tpu_custom_call.1} parent=35 // pred_fallthru
          _
      $region36: #{tpu_custom_call.1} parent=5 // pred_fallthru
        _
      %p534 = scmp.le.s32.totalorder 2, %s17
      // Predicated region
      $region65: #{tpu_custom_call.1} parent=5 // pred_check
        %p535 = pneg %p534
      $region66: #{tpu_custom_call.1} parent=5 // pred_check_branch
        %537 = sbr.rel (%p535) target = $region68
      $region67: #{tpu_custom_call.1} parent=5 // pred_region
        %s538 = ssub.s32 %s17, 2
      $region68: #{tpu_custom_call.1} parent=5 // pred_fallthru
        _
    $region6: #{tpu_custom_call.1} parent=1 // loop_footer
      %s21 = sadd.s32 1, %s17
    $region7: #{tpu_custom_call.1} parent=1 // loop_footer_branch
      %16 = sbr.rel target = $region3
    $region8: #{tpu_custom_call.1} parent=1 // loop_exit
      _
    %539 = vsyncpa [#allocation4], 1
    %s540 = scalar_lea.sflag [#allocation4], 1
    %541 = vsyncpa %s540, 1
    %542 = vsyncpa [#allocation7], 1
    %s543 = scalar_lea.sflag [#allocation7], 1
    %544 = vsyncpa %s543, 1
    %545 = vsyncpa [#allocation5], 1
    %s546 = scalar_lea.sflag [#allocation5], 1
    %547 = vsyncpa %s546, 1

</llo_original>
